<compile_context>
chip_gen: v6e
topology: v6e:2x2x1
jax: 0.10.0
libtpu: 0.0.40
codegen_flags: <defaults>
</compile_context>

<pallas_src>
import jax
import jax.numpy as jnp
import numpy as np
from jax.experimental import pallas as pl
from jax.experimental.pallas import tpu as pltpu


# ------------------------------ helpers ----------------------------------- #
def _round_up(x, m):
    return ((x + m - 1) // m) * m


def _pick_tile(full, pref, candidates):
    """Pick a tile for a 128-lane dimension: full dim if small, else the
    largest candidate that divides it, else the full dim."""
    if full <= pref:
        return full
    for c in candidates:
        if full % c == 0:
            return c
    return full


# ----------------------------- Pallas kernel ------------------------------ #
def _linear_bias_kernel(x_ref, w_ref, b_ref, o_ref, acc_ref):
    # x_ref: (tm, tk), w_ref: (tk, tn), b_ref: (1, tn), o_ref: (tm, tn)
    # acc_ref: (tm, tn) f32 accumulator, resident across the K grid axis.
    @pl.when(pl.program_id(2) == 0)
    def _init():
        acc_ref[...] = jnp.zeros_like(acc_ref)

    acc_ref[...] += jnp.dot(x_ref[...], w_ref[...],
                            preferred_element_type=jnp.float32)

    @pl.when(pl.program_id(2) == pl.num_programs(2) - 1)
    def _finalize():
        o_ref[...] = (acc_ref[...] +
                      b_ref[...].astype(jnp.float32)).astype(o_ref.dtype)


def pallas_linear(x2d, w, b, *, tm_max=256, tn_max=256, tk_max=512):
    """y = x2d @ w + b on the MXU.

    x2d: (M, K)   w: (K, N)   b: (N,)   ->   (M, N)
    M is padded up to the row tile (no divisibility requirement); N and K are
    tiled when they are large and 128-aligned, otherwise used whole.
    """
    M, K = x2d.shape
    K2, N = w.shape
    assert K == K2, (K, K2)
    out_dtype = x2d.dtype

    # Row tile: large MXU-friendly tile, pad M instead of shrinking the tile.
    tm = min(tm_max, _round_up(M, 8))
    M_p = _round_up(M, tm)
    if M_p != M:
        x2d = jnp.pad(x2d, ((0, M_p - M), (0, 0)))

    # Reduction / output-feature tiles (lane-dense multiples of 128 when big).
    tk = _pick_tile(K, tk_max, (512, 256, 128))
    tn = _pick_tile(N, tn_max, (256, 128))

    grid = (M_p // tm, N // tn, K // tk)

    # VMEM budget: double-buffered x/w/out tiles + f32 accumulator + bias.
    isz = jnp.dtype(out_dtype).itemsize
    vmem_need = (2 * tm * tk * isz + 2 * tk * tn * jnp.dtype(w.dtype).itemsize
                 + 2 * tm * tn * isz + tm * tn * 4
                 + 2 * tn * jnp.dtype(b.dtype).itemsize)
    vmem_limit = min(max(int(vmem_need * 1.5) + (4 << 20), 32 << 20), 100 << 20)

    out = pl.pallas_call(
        _linear_bias_kernel,
        out_shape=jax.ShapeDtypeStruct((M_p, N), out_dtype),
        grid_spec=pltpu.PrefetchScalarGridSpec(
            num_scalar_prefetch=0,
            grid=grid,
            in_specs=[
                pl.BlockSpec((tm, tk), lambda i, j, k: (i, k)),   # x row tile
                pl.BlockSpec((tk, tn), lambda i, j, k: (k, j)),   # weight tile
                pl.BlockSpec((1, tn), lambda i, j, k: (0, j)),    # bias tile
            ],
            out_specs=pl.BlockSpec((tm, tn), lambda i, j, k: (i, j)),
            scratch_shapes=[pltpu.VMEM((tm, tn), jnp.float32)],
        ),
        compiler_params=pltpu.CompilerParams(
            dimension_semantics=("parallel", "parallel", "arbitrary"),
            vmem_limit_bytes=vmem_limit,
        ),
    )(x2d, w, b.reshape(1, N))

    return out[:M] if M_p != M else out


# --------------------------- LinearProjection ------------------------------ #
def init_linear_projection_params(key, dim, heads=8, dim_head=64,
                                  dtype=jnp.float32):
    """PyTorch nn.Linear-style init; weights stored (in_features, out)."""
    inner_dim = dim_head * heads
    k1, k2, k3, k4 = jax.random.split(key, 4)
    bound = 1.0 / np.sqrt(dim)
    w_q = jax.random.uniform(k1, (dim, inner_dim), dtype, -bound, bound)
    b_q = jax.random.uniform(k2, (inner_dim,), dtype, -bound, bound)
    w_kv = jax.random.uniform(k3, (dim, 2 * inner_dim), dtype, -bound, bound)
    b_kv = jax.random.uniform(k4, (2 * inner_dim,), dtype, -bound, bound)
    # Pre-fused q||kv weights for the attn_kv=None fast path (one matmul).
    w_qkv = jnp.concatenate([w_q, w_kv], axis=1)
    b_qkv = jnp.concatenate([b_q, b_kv], axis=0)
    return dict(w_q=w_q, b_q=b_q, w_kv=w_kv, b_kv=b_kv,
                w_qkv=w_qkv, b_qkv=b_qkv,
                heads=heads, dim=dim, inner_dim=inner_dim)


def linear_projection_forward(params, x, attn_kv=None):
    """Pallas implementation of LinearProjection.forward.

    x: (B, N, C); attn_kv: optional (N_kv, C) shared across batch.
    Returns q, k, v with shapes (B, heads, N, C//heads) /
    (B, heads, N_kv, C//heads).
    """
    B, N, C = x.shape
    heads = params["heads"]
    inner = params["inner_dim"]
    dh = C // heads

    if attn_kv is None:
        # Fused q+kv projection: one pass over x, one wide lane-dense matmul.
        out = pallas_linear(x.reshape(B * N, C),
                            params["w_qkv"], params["b_qkv"])
        q_flat = out[:, :inner]
        kv_flat = out[:, inner:]
        q = q_flat.reshape(B, N, heads, dh).transpose(0, 2, 1, 3)
        kv = kv_flat.reshape(B, N, 2, heads, dh).transpose(2, 0, 3, 1, 4)
        k, v = kv[0], kv[1]
    else:
        # q from x; kv computed ONCE on (N_kv, C), result broadcast over batch.
        q_flat = pallas_linear(x.reshape(B * N, C),
                               params["w_q"], params["b_q"])
        q = q_flat.reshape(B, N, heads, dh).transpose(0, 2, 1, 3)

        N_kv = attn_kv.shape[0]
        kv_flat = pallas_linear(attn_kv, params["w_kv"], params["b_kv"])
        kv = kv_flat.reshape(N_kv, 2, heads, dh).transpose(1, 2, 0, 3)
        k = jnp.broadcast_to(kv[0][None], (B, heads, N_kv, dh))
        v = jnp.broadcast_to(kv[1][None], (B, heads, N_kv, dh))
    return q, k, v


# --------------------------------- main ------------------------------------ #
if __name__ == "__main__":
    key = jax.random.PRNGKey(0)

    # --- Small shapes matching the module (inner_dim == C so the torch
    #     reshape(B, N, ..., heads, C // heads) is valid). --- #
    B, N, heads, dim_head = 2, 8, 4, 8
    dim = heads * dim_head            # C = 32, inner_dim = 32
    kp, kx, ka = jax.random.split(key, 3)
    params = init_linear_projection_params(kp, dim, heads=heads,
                                           dim_head=dim_head)
    x = jax.random.normal(kx, (B, N, dim), jnp.float32)

    # Self-attention path (fused q+kv matmul).
    q, k, v = linear_projection_forward(params, x)
    jax.block_until_ready((q, k, v))

    q_ref = (x.reshape(B * N, dim) @ params["w_q"] + params["b_q"]) \
        .reshape(B, N, heads, dim // heads).transpose(0, 2, 1, 3)
    kv_ref = (x.reshape(B * N, dim) @ params["w_kv"] + params["b_kv"]) \
        .reshape(B, N, 2, heads, dim // heads).transpose(2, 0, 3, 1, 4)
    np.testing.assert_allclose(np.asarray(q), np.asarray(q_ref),
                               rtol=1e-5, atol=1e-5)
    np.testing.assert_allclose(np.asarray(k), np.asarray(kv_ref[0]),
                               rtol=1e-5, atol=1e-5)
    np.testing.assert_allclose(np.asarray(v), np.asarray(kv_ref[1]),
                               rtol=1e-5, atol=1e-5)
    assert q.shape == (B, heads, N, dim // heads)

    # Cross-attention path (shared attn_kv, projected once then broadcast).
    N_kv = 8
    attn_kv = jax.random.normal(ka, (N_kv, dim), jnp.float32)
    q2, k2, v2 = linear_projection_forward(params, x, attn_kv=attn_kv)
    jax.block_until_ready((q2, k2, v2))
    kv2_ref = (attn_kv @ params["w_kv"] + params["b_kv"]) \
        .reshape(N_kv, 2, heads, dim // heads).transpose(1, 2, 0, 3)
    np.testing.assert_allclose(np.asarray(k2),
                               np.broadcast_to(np.asarray(kv2_ref[0])[None],
                                               (B, heads, N_kv, dim // heads)),
                               rtol=1e-5, atol=1e-5)
    np.testing.assert_allclose(np.asarray(v2),
                               np.broadcast_to(np.asarray(kv2_ref[1])[None],
                                               (B, heads, N_kv, dim // heads)),
                               rtol=1e-5, atol=1e-5)

    # --- Slightly larger shape to exercise the tiled / padded path
    #     (M = 400 -> tm = 256, M padded to 512; fused N = 384 -> tn = 128). --- #
    B2, N2, heads2, dim_head2 = 2, 200, 8, 16
    dim2 = heads2 * dim_head2         # C = 128
    kp2, kx2 = jax.random.split(jax.random.PRNGKey(1))
    params2 = init_linear_projection_params(kp2, dim2, heads=heads2,
                                            dim_head=dim_head2)
    x2 = jax.random.normal(kx2, (B2, N2, dim2), jnp.float32)
    q3, k3, v3 = linear_projection_forward(params2, x2)
    jax.block_until_ready((q3, k3, v3))
    q3_ref = (np.asarray(x2).reshape(B2 * N2, dim2) @ np.asarray(params2["w_q"])
              + np.asarray(params2["b_q"])) \
        .reshape(B2, N2, heads2, dim2 // heads2).transpose(0, 2, 1, 3)
    np.testing.assert_allclose(np.asarray(q3), q3_ref, rtol=1e-2, atol=1e-2)
    assert q3.shape == (B2, heads2, N2, dim2 // heads2)
    assert k3.shape == (B2, heads2, N2, dim2 // heads2)

    print("KERNEL_OK")
</pallas_src>

<mosaic_0001>
module attributes {stable_mosaic.version = 11 : i64} {
  func.func @_linear_bias_kernel(%arg0: i32, %arg1: i32, %arg2: i32, %arg3: memref<16x32xf32, #tpu.memory_space<vmem>>, %arg4: memref<32x96xf32, #tpu.memory_space<vmem>>, %arg5: memref<1x96xf32, #tpu.memory_space<vmem>>, %arg6: memref<16x96xf32, #tpu.memory_space<vmem>>, %arg7: memref<16x96xf32, #tpu.memory_space<vmem>>) attributes {dimension_semantics = [#tpu.dimension_semantics<parallel>, #tpu.dimension_semantics<parallel>, #tpu.dimension_semantics<arbitrary>], iteration_bounds = array<i64: 1, 1, 1>, scalar_prefetch = 0 : i64, scratch_operands = 1 : i64, tpu.core_type = #tpu.core_type<tc>, window_params = [{transform_indices = @transform_0, window_bounds = array<i64: 16, 32>}, {transform_indices = @transform_1, window_bounds = array<i64: 32, 96>}, {transform_indices = @transform_2, window_bounds = array<i64: 1, 96>}, {transform_indices = @transform_3, window_bounds = array<i64: 16, 96>}]} {
    %c0_i32 = arith.constant 0 : i32
    %0 = arith.cmpi eq, %arg2, %c0_i32 : i32
    %1 = arith.extui %0 : i1 to i32
    %c0_i32_0 = arith.constant 0 : i32
    %2 = arith.cmpi ne, %1, %c0_i32_0 : i32
    scf.if %2 {
      %cst_10 = arith.constant 0.000000e+00 : f32
      %12 = vector.broadcast %cst_10 : f32 to vector<16x96xf32>
      %c0_11 = arith.constant 0 : index
      %c0_12 = arith.constant 0 : index
      %13 = vector.load %arg7[%c0_11, %c0_12] : memref<16x96xf32, #tpu.memory_space<vmem>>, vector<16x96xf32>
      tpu.vector_store %arg7[%c0_11, %c0_12], %12 {strides = array<i32>} : memref<16x96xf32, #tpu.memory_space<vmem>>, vector<16x96xf32>,
    } else {
    }
    %c0 = arith.constant 0 : index
    %c0_1 = arith.constant 0 : index
    %3 = vector.load %arg7[%c0, %c0_1] : memref<16x96xf32, #tpu.memory_space<vmem>>, vector<16x96xf32>
    %c0_2 = arith.constant 0 : index
    %c0_3 = arith.constant 0 : index
    %4 = vector.load %arg3[%c0_2, %c0_3] : memref<16x32xf32, #tpu.memory_space<vmem>>, vector<16x32xf32>
    %c0_4 = arith.constant 0 : index
    %c0_5 = arith.constant 0 : index
    %5 = vector.load %arg4[%c0_4, %c0_5] : memref<32x96xf32, #tpu.memory_space<vmem>>, vector<32x96xf32>
    %cst = arith.constant dense<0.000000e+00> : vector<16x96xf32>
    %6 = tpu.matmul %4, %5, %cst {dimension_numbers = #tpu.dot_dimension_numbers<[1], [0], [0], [1], [0, 0, 1, 1], [], []>} : vector<16x32xf32>, vector<32x96xf32>, vector<16x96xf32> -> vector<16x96xf32>
    %7 = arith.addf %3, %6 : vector<16x96xf32>
    %c0_6 = arith.constant 0 : index
    %c0_7 = arith.constant 0 : index
    %8 = vector.load %arg7[%c0_6, %c0_7] : memref<16x96xf32, #tpu.memory_space<vmem>>, vector<16x96xf32>
    tpu.vector_store %arg7[%c0_6, %c0_7], %7 {strides = array<i32>} : memref<16x96xf32, #tpu.memory_space<vmem>>, vector<16x96xf32>,
    %c0_i32_8 = arith.constant 0 : i32
    %9 = arith.cmpi eq, %arg2, %c0_i32_8 : i32
    %10 = arith.extui %9 : i1 to i32
    %c0_i32_9 = arith.constant 0 : i32
    %11 = arith.cmpi ne, %10, %c0_i32_9 : i32
    scf.if %11 {
      %c0_10 = arith.constant 0 : index
      %c0_11 = arith.constant 0 : index
      %12 = vector.load %arg7[%c0_10, %c0_11] : memref<16x96xf32, #tpu.memory_space<vmem>>, vector<16x96xf32>
      %c0_12 = arith.constant 0 : index
      %c0_13 = arith.constant 0 : index
      %13 = vector.load %arg5[%c0_12, %c0_13] : memref<1x96xf32, #tpu.memory_space<vmem>>, vector<1x96xf32>
      %14 = vector.broadcast %13 : vector<1x96xf32> to vector<16x96xf32>
      %15 = arith.addf %12, %14 : vector<16x96xf32>
      %c0_14 = arith.constant 0 : index
      %c0_15 = arith.constant 0 : index
      %16 = vector.load %arg6[%c0_14, %c0_15] : memref<16x96xf32, #tpu.memory_space<vmem>>, vector<16x96xf32>
      tpu.vector_store %arg6[%c0_14, %c0_15], %15 {strides = array<i32>} : memref<16x96xf32, #tpu.memory_space<vmem>>, vector<16x96xf32>,
    } else {
    }
    return
  }
  func.func @transform_0(%arg0: i32, %arg1: i32, %arg2: i32) -> (i32, i32) {
    %c0_i32 = arith.constant 0 : i32
    return %arg0, %arg2 : i32, i32
  }
  func.func @transform_1(%arg0: i32, %arg1: i32, %arg2: i32) -> (i32, i32) {
    %c0_i32 = arith.constant 0 : i32
    return %arg2, %arg1 : i32, i32
  }
  func.func @transform_2(%arg0: i32, %arg1: i32, %arg2: i32) -> (i32, i32) {
    %c0_i32 = arith.constant 0 : i32
    %c0_i32_0 = arith.constant 0 : i32
    return %c0_i32, %arg1 : i32, i32
  }
  func.func @transform_3(%arg0: i32, %arg1: i32, %arg2: i32) -> (i32, i32) {
    %c0_i32 = arith.constant 0 : i32
    return %arg0, %arg1 : i32, i32
  }
}

</mosaic_0001>

<llo_original>
// kernel: tpu_custom_call.1
$region0: #{tpu_custom_call.1}
  #allocation0 [shape = 'u32[]', space=smem, size = 0x4, offset = 0x4, fixed_abs, tag = 'smem constant byte address 0x4 - core index']
  #allocation1 [shape = 'u32[144,128]{1,0:T(1,128)}', space=vmem, size = 0x12000, scoped, tag = 'internal scratch']
  #allocation2 [shape = 'f32[16,96]{1,0:T(8,128)}', space=vmem, size = 0x2000, scoped, tag = 'scratch operand']
  %s0 = inlined_call_operand.hbm [shape: f32[16,32], index: 0, kind: input, shape index: {}]
  %s1 = inlined_call_operand.hbm [shape: f32[32,96], index: 1, kind: input, shape index: {}]
  %s2 = inlined_call_operand.vmem [shape: f32[1,96], index: 2, kind: input, shape index: {}]
  %s3 = inlined_call_operand.hbm [shape: f32[16,96], index: 3, kind: output, shape index: {}]
  %s4 = sld [smem:[#allocation0]]
  $region38: #{tpu_custom_call.1} parent=0
    _
  %s6 = ssub.s32 1, %s4
  %s7 = scalar_select 0, %s6, %s4
  $region1: #{tpu_custom_call.1} parent=0
    #allocation3 [shape = 'u8[8192]{0}', space=vmem, size = 0x2000, scoped, tag = 'input window, operand 0, single buffered']
    #allocation4 [shape = 's32[1]{0}', space=sflag, size = 0x4, scoped, tag = 'scoped memory for tpu_custom_call.1']
    #allocation5 [shape = 's32[1]{0}', space=sflag, size = 0x4, scoped, tag = 'scoped memory for tpu_custom_call.1']
    #allocation6 [shape = 'u8[16384]{0}', space=vmem, size = 0x4000, scoped, tag = 'input window, operand 1, single buffered']
    #allocation7 [shape = 's32[1]{0}', space=sflag, size = 0x4, scoped, tag = 'scoped memory for tpu_custom_call.1']
    #allocation8 [shape = 'u8[8192]{0}', space=vmem, size = 0x2000, scoped, tag = 'output window, operand 0, single buffered']
    %8 = vsyncpa [#allocation4], 0
    %9 = vsyncpa [#allocation7], 0
    %10 = vsyncpa [#allocation5], 0
    // Predicated region
    $region2: #{tpu_custom_call.1} parent=1 // pred_check
      _
    $region3: #{tpu_custom_call.1} parent=1 // pred_check_branch
      %12 = sbr.rel (0) target = $region5
    $region4: #{tpu_custom_call.1} parent=1 // pred_region
      %s14 = ssub.s32 256, 256
      %15 = vsyncadd [#allocation4], %s14
      %s16 = sshll.u32 [#allocation3], 4
      %s17 = int_to_ptr.vmem [resolvable:$true] %s16
      %22 = dma.hbm_to_vmem [thread:$0]  %s0, 256, %s17, [#allocation4], 128, 128, 8
    $region5: #{tpu_custom_call.1} parent=1 // pred_fallthru
      _
    // Predicated region
    $region6: #{tpu_custom_call.1} parent=1 // pred_check
      _
    $region7: #{tpu_custom_call.1} parent=1 // pred_check_branch
      %24 = sbr.rel (0) target = $region9
    $region8: #{tpu_custom_call.1} parent=1 // pred_region
      %s26 = ssub.s32 512, 512
      %27 = vsyncadd [#allocation7], %s26
      %s28 = sshll.u32 [#allocation6], 4
      %s29 = int_to_ptr.vmem [resolvable:$true] %s28
      %34 = dma.hbm_to_vmem [thread:$0]  %s1, 512, %s29, [#allocation7], 128, 128, 8
    $region9: #{tpu_custom_call.1} parent=1 // pred_fallthru
      _
    // Predicated region
    $region10: #{tpu_custom_call.1} parent=1 // pred_check
      _
    $region11: #{tpu_custom_call.1} parent=1 // pred_check_branch
      %36 = sbr.rel (0) target = $region13
    $region12: #{tpu_custom_call.1} parent=1 // pred_region
      _
    $region13: #{tpu_custom_call.1} parent=1 // pred_fallthru
      _
    // Predicated region
    $region14: #{tpu_custom_call.1} parent=1 // pred_check
      _
    $region15: #{tpu_custom_call.1} parent=1 // pred_check_branch
      %38 = sbr.rel (0) target = $region17
    $region16: #{tpu_custom_call.1} parent=1 // pred_region
      %39 = dma.done [#allocation4], 256
    $region17: #{tpu_custom_call.1} parent=1 // pred_fallthru
      _
    // Predicated region
    $region18: #{tpu_custom_call.1} parent=1 // pred_check
      _
    $region19: #{tpu_custom_call.1} parent=1 // pred_check_branch
      %41 = sbr.rel (0) target = $region21
    $region20: #{tpu_custom_call.1} parent=1 // pred_region
      %42 = dma.done [#allocation7], 512
    $region21: #{tpu_custom_call.1} parent=1 // pred_fallthru
      _
    %p43 = scmp.eq.s32.totalorder 0, 0
    // Predicated region
    $region22: #{tpu_custom_call.1} parent=1 // pred_check
      %p44 = pneg %p43
    $region23: #{tpu_custom_call.1} parent=1 // pred_check_branch
      %46 = sbr.rel (%p44) target = $region25
    $region24: #{tpu_custom_call.1} parent=1 // pred_region
      %vm47 = vcmask 785408
      %48 = vst.msk [vmem:[#allocation2] sm:$0xff] %vm47, 0.0
      %49 = vst.msk [vmem:[#allocation2 + $0x8] sm:$0xff] %vm47, 0.0
    $region25: #{tpu_custom_call.1} parent=1 // pred_fallthru
      _
    %v50 = vld [vmem:[#allocation2] sm:$0xff]
    %v51 = vld [vmem:[#allocation2 + $0x8] sm:$0xff]
    %v52 = vld [vmem:[#allocation3] sm:$0xff]
    %v53 = vld [vmem:[#allocation3 + $0x8] sm:$0xff]
    %v54 = vld [vmem:[#allocation6] sm:$0xff]
    %v55 = vld [vmem:[#allocation6 + $0x8] sm:$0xff]
    %v56 = vld [vmem:[#allocation6 + $0x10] sm:$0xff]
    %v57 = vld [vmem:[#allocation6 + $0x18] sm:$0xff]
    %vm58 = vcmask 261120
    %v60 = vsel %vm58, %v52, 0
    %v63 = vsel %vm58, %v53, 0
    %65 = vmatprep.subr.mxu0 0.0
    %66 = vmatpush1.msra.mxu0 0.0
    %67 = vmatprep.subr.mxu0 0.0
    %68 = vmatpush1.msra.mxu0 0.0
    %69 = vmatprep.subr.mxu0 0.0
    %70 = vmatpush1.msra.mxu0 0.0
    %71 = vmatprep.subr.mxu0 0.0
    %72 = vmatpush1.msra.mxu0 0.0
    %73 = vmatprep.subr.mxu0 0.0
    %74 = vmatpush1.msra.mxu0 0.0
    %75 = vmatprep.subr.mxu0 0.0
    %76 = vmatpush1.msra.mxu0 0.0
    %77 = vmatprep.subr.mxu0 0.0
    %78 = vmatpush1.msra.mxu0 0.0
    %79 = vmatprep.subr.mxu0 0.0
    %80 = vmatpush1.msra.mxu0 0.0
    %81 = vmatprep.subr.mxu0 0.0
    %82 = vmatpush1.msra.mxu0 0.0
    %83 = vmatprep.subr.mxu0 0.0
    %84 = vmatpush1.msra.mxu0 0.0
    %85 = vmatprep.subr.mxu0 0.0
    %86 = vmatpush1.msra.mxu0 0.0
    %87 = vmatprep.subr.mxu0 0.0
    %88 = vmatpush1.msra.mxu0 0.0
    %89 = vmatprep.subr.mxu0 0.0
    %90 = vmatpush1.msra.mxu0 %v57
    %91 = vmatprep.subr.mxu0 0.0
    %92 = vmatpush1.msra.mxu0 %v56
    %93 = vmatprep.subr.mxu0 0.0
    %94 = vmatpush1.msra.mxu0 %v55
    %95 = vmatprep.subr.mxu0 0.0
    %96 = vmatpush1.msra.mxu0 %v54
    %97 = vmatprep.subr.mxu0 0.0
    %98 = vmatpush2.msra.mxu0 0.0
    %99 = vmatprep.subr.mxu0 0.0
    %100 = vmatpush2.msra.mxu0 0.0
    %101 = vmatprep.subr.mxu0 0.0
    %102 = vmatpush2.msra.mxu0 0.0
    %103 = vmatprep.subr.mxu0 0.0
    %104 = vmatpush2.msra.mxu0 0.0
    %105 = vmatprep.subr.mxu0 0.0
    %106 = vmatpush2.msra.mxu0 0.0
    %107 = vmatprep.subr.mxu0 0.0
    %108 = vmatpush2.msra.mxu0 0.0
    %109 = vmatprep.subr.mxu0 0.0
    %110 = vmatpush2.msra.mxu0 0.0
    %111 = vmatprep.subr.mxu0 0.0
    %112 = vmatpush2.msra.mxu0 0.0
    %113 = vmatprep.subr.mxu0 0.0
    %114 = vmatpush2.msra.mxu0 0.0
    %115 = vmatprep.subr.mxu0 0.0
    %116 = vmatpush2.msra.mxu0 0.0
    %117 = vmatprep.subr.mxu0 0.0
    %118 = vmatpush2.msra.mxu0 0.0
    %119 = vmatprep.subr.mxu0 0.0
    %120 = vmatpush2.msra.mxu0 0.0
    %121 = vmatprep.subr.mxu0 0.0
    %122 = vmatpush2.msra.mxu0 0.0
    %123 = vmatprep.subr.mxu0 0.0
    %124 = vmatpush2.msra.mxu0 0.0
    %125 = vmatprep.subr.mxu0 0.0
    %126 = vmatpush2.msra.mxu0 0.0
    %127 = vmatprep.subr.mxu0 0.0
    %128 = vmatpush2.msra.mxu0 0.0
    %129 = vmatprep.mubr.f32.mxu0 0.0
    %130 = vmatmul.mubr.f32.gmra.mxu0 %v60
    %v131 = vpop.f32.mrf.mxu0
    %v132 = vadd.f32 0.0, %v131
    %v133 = vpop.f32.mrf.mxu0
    %134 = vmatprep.mubr.f32.mxu0 0.0
    %135 = vmatmul.mubr.f32.gmra.mxu0 %v63
    %v136 = vpop.f32.mrf.mxu0
    %v137 = vadd.f32 0.0, %v136
    %v138 = vpop.f32.mrf.mxu0
    %139 = vdwg.mxu0
    %v140 = vadd.f32 %v50, %v132
    %v141 = vadd.f32 %v51, %v137
    %vm142 = vcmask 785408
    %143 = vst.msk [vmem:[#allocation2] sm:$0xff] %vm142, %v140
    %144 = vst.msk [vmem:[#allocation2 + $0x8] sm:$0xff] %vm142, %v141
    // Predicated region
    $region26: #{tpu_custom_call.1} parent=1 // pred_check
      %p145 = pneg %p43
    $region27: #{tpu_custom_call.1} parent=1 // pred_check_branch
      %147 = sbr.rel (%p145) target = $region29
    $region28: #{tpu_custom_call.1} parent=1 // pred_region
      %v148 = vld [vmem:[#allocation2] sm:$0xff]
      %v149 = vld [vmem:[#allocation2 + $0x8] sm:$0xff]
      %v150 = vld [vmem:[%s2] sm:$0x1]
      %v152 = vlaneseq
      %v153 = vshrl.u32 %v152, 7
      %v154 = vsub.s32 0, %v153
      %v155 = vrot.slane %v150, %v154
      %v157 = vadd.f32 %v148, %v155
      %v158 = vadd.f32 %v149, %v155
      %159 = vst.msk [vmem:[#allocation8] sm:$0xff] %vm142, %v157
      %160 = vst.msk [vmem:[#allocation8 + $0x8] sm:$0xff] %vm142, %v158
    $region29: #{tpu_custom_call.1} parent=1 // pred_fallthru
      _
    // Predicated region
    $region30: #{tpu_custom_call.1} parent=1 // pred_check
      _
    $region31: #{tpu_custom_call.1} parent=1 // pred_check_branch
      %162 = sbr.rel (0) target = $region33
    $region32: #{tpu_custom_call.1} parent=1 // pred_region
      %s164 = ssub.s32 256, 256
      %165 = vsyncadd [#allocation5], %s164
      %s166 = sshll.u32 [#allocation8], 4
      %s167 = int_to_ptr.vmem [resolvable:$true] %s166
      %172 = dma.vmem_to_hbm [thread:$0]  %s167, 256, %s3, [#allocation5], 128, 128, 8
    $region33: #{tpu_custom_call.1} parent=1 // pred_fallthru
      _
    // Predicated region
    $region34: #{tpu_custom_call.1} parent=1 // pred_check
      _
    $region35: #{tpu_custom_call.1} parent=1 // pred_check_branch
      %174 = sbr.rel (0) target = $region37
    $region36: #{tpu_custom_call.1} parent=1 // pred_region
      %175 = dma.done [#allocation5], 256
    $region37: #{tpu_custom_call.1} parent=1 // pred_fallthru
      _
    %176 = vsyncpa [#allocation4], 1
    %177 = vsyncpa [#allocation7], 1
    %178 = vsyncpa [#allocation5], 1

</llo_original>
